<compile_context>
chip_gen: v6e
topology: v6e:2x2x1
jax: 0.10.0
libtpu: 0.0.40
codegen_flags: <defaults>
</compile_context>

<pallas_src>
import math

import jax
import jax.numpy as jnp
import numpy as np
from jax.experimental import pallas as pl
from jax.experimental.pallas import tpu as pltpu

PI_MIX = 0.5
SIGMA_1 = math.exp(-0.0)   # 1.0
SIGMA_2 = math.exp(-6.0)
SQRT_2PI = math.sqrt(2.0 * math.pi)
LOG_SQRT_2PI = math.log(SQRT_2PI)

# Scale-mixture prior constants folded at trace time:
#   log_prob(v) = sum log( C1*exp(K1*v^2) + C2*exp(K2*v^2) )
_C1 = PI_MIX / (SIGMA_1 * SQRT_2PI)
_C2 = (1.0 - PI_MIX) / (SIGMA_2 * SQRT_2PI)
_K1 = -0.5 / (SIGMA_1 * SIGMA_1)
_K2 = -0.5 / (SIGMA_2 * SIGMA_2)


def _softplus(x):
    # Numerically stable softplus: identical to log1p(exp(x)) for x < 0
    # (the init range), no overflow for large positive rho.
    return jnp.maximum(x, 0.0) + jnp.log1p(jnp.exp(-jnp.abs(x)))


def _mixture_logprob_sum(v):
    # Linear-space mixture (matches the PyTorch reference).  v*v computed once,
    # normalizers / -0.5/sigma^2 folded into constants -> only 2 exps + 1 log
    # per element hit the (single-slot) EUP; the multiplies stay on the VPU.
    v2 = v * v
    return jnp.sum(jnp.log(_C1 * jnp.exp(_K1 * v2) + _C2 * jnp.exp(_K2 * v2)))


def _make_kernel(do_sample, do_logs, mxu_dtype):
    """Build a kernel variant; which refs exist depends on the static flags."""

    def kernel(*refs):
        refs = list(refs)
        x_ref = refs.pop(0)                                           # (B, in_f)
        wmu_ref = refs.pop(0)                                         # (in_f, bn)
        wrho_ref = refs.pop(0) if (do_sample or do_logs) else None    # (in_f, bn)
        weps_ref = refs.pop(0) if do_sample else None                 # (in_f, bn)
        bmu_ref = refs.pop(0)                                         # (1, bn)
        brho_ref = refs.pop(0) if (do_sample or do_logs) else None    # (1, bn)
        beps_ref = refs.pop(0) if do_sample else None                 # (1, bn)
        y_ref = refs.pop(0)                                           # (B, bn)
        logs_ref = refs.pop(0) if do_logs else None                   # (1, 2) SMEM

        w_mu = wmu_ref[...]
        b_mu = bmu_ref[...]

        w_sigma = b_sigma = None
        if do_sample or do_logs:
            w_sigma = _softplus(wrho_ref[...])
            b_sigma = _softplus(brho_ref[...])

        if do_sample:
            w_eps = weps_ref[...]
            b_eps = beps_ref[...]
            w = w_mu + w_sigma * w_eps
            b = b_mu + b_sigma * b_eps
        else:
            w = w_mu
            b = b_mu

        # y = x @ W^T + b.  W^T tile is already (K, N): feeds the MXU directly,
        # output lane dim = out_features tile (lane-dense stores).
        y = jnp.dot(x_ref[...].astype(mxu_dtype), w.astype(mxu_dtype),
                    preferred_element_type=jnp.float32)
        y_ref[...] = (y + b).astype(y_ref.dtype)

        if do_logs:
            # scale-mixture prior over this tile's weights + biases
            lp = _mixture_logprob_sum(w) + _mixture_logprob_sum(b)

            # variational posterior: since v - mu = sigma * eps,
            # (v-mu)^2 / (2 sigma^2) == 0.5 * eps^2 exactly.
            n_el = float(w.shape[0] * w.shape[1] + b.shape[0] * b.shape[1])
            lvp = (-n_el * LOG_SQRT_2PI
                   - jnp.sum(jnp.log(w_sigma)) - jnp.sum(jnp.log(b_sigma)))
            if do_sample:
                lvp = lvp - 0.5 * (jnp.sum(w_eps * w_eps)
                                   + jnp.sum(b_eps * b_eps))

            # accumulate across out_features tiles in the resident SMEM output
            @pl.when(pl.program_id(0) == 0)
            def _():
                logs_ref[0, 0] = jnp.float32(0.0)
                logs_ref[0, 1] = jnp.float32(0.0)

            logs_ref[0, 0] += lp
            logs_ref[0, 1] += lvp

    return kernel


def _pick_block_n(out_f, in_f, n_weight_streams):
    """out_features tile: a multiple of 128 dividing out_f (lane-dense, unmasked
    stores), sized so n_streams x 2 (double-buffer) x (in_f x bn x 4B) stays
    within a conservative budget that fits every generation's scoped-VMEM
    default (v7x has only 64 MiB physical VMEM)."""
    if out_f % 128 != 0:
        # Small / ragged layers: single full-width block.  (Padding to 128 would
        # corrupt the log-prob sums without extra masking.)
        return out_f
    budget = 16 * 1024 * 1024
    bn = 128
    while (out_f % (2 * bn) == 0 and 2 * bn <= 2048
           and n_weight_streams * 2 * in_f * (2 * bn) * 4 <= budget):
        bn *= 2
    return bn


def bayesian_linear(x, weight_mu, weight_rho, bias_mu, bias_rho, *,
                    key=None, sample=False, calculate_log_probs=False,
                    training=False, block_n=None, mxu_dtype=jnp.float32):
    """Pallas-backed forward of BayesianLinear.

    Mirrors the PyTorch module: samples W,b when (training or sample), computes
    log_prior / log_variational_posterior when (training or calculate_log_probs),
    otherwise returns zeros for the log terms.  Returns (y, log_prior, log_vp).
    Pass mxu_dtype=jnp.bfloat16 on v6e/v7x for the matmul operands.
    """
    B, in_f = x.shape
    out_f, in_f2 = weight_mu.shape
    assert in_f == in_f2, "x / weight_mu shape mismatch"

    do_sample = bool(training or sample)
    do_logs = bool(training or calculate_log_probs)

    # Present weights as W^T = (in_f, out_f); biases as (1, out_f) slabs.
    wmu_t = weight_mu.T
    bmu2 = bias_mu.reshape(1, out_f)

    inputs = [x, wmu_t]
    if do_sample or do_logs:
        inputs.append(weight_rho.T)
    if do_sample:
        if key is None:
            raise ValueError("sampling path requires a PRNG key")
        kw, kb = jax.random.split(key)
        w_eps = jax.random.normal(kw, (out_f, in_f), dtype=jnp.float32)
        b_eps = jax.random.normal(kb, (out_f,), dtype=jnp.float32)
        inputs.append(w_eps.T)
    inputs.append(bmu2)
    if do_sample or do_logs:
        inputs.append(bias_rho.reshape(1, out_f))
    if do_sample:
        inputs.append(b_eps.reshape(1, out_f))

    n_weight_streams = 1 + int(do_sample or do_logs) + int(do_sample)
    if block_n is None:
        block_n = _pick_block_n(out_f, in_f, n_weight_streams)
    assert out_f % block_n == 0, "block_n must divide out_features"
    assert block_n == out_f or block_n % 128 == 0, \
        "block_n must be a multiple of 128 or the full out_features"
    n_tiles = out_f // block_n

    x_spec = pl.BlockSpec((B, in_f), lambda j: (0, 0))
    w_spec = pl.BlockSpec((in_f, block_n), lambda j: (0, j))
    b_spec = pl.BlockSpec((1, block_n), lambda j: (0, j))
    y_spec = pl.BlockSpec((B, block_n), lambda j: (0, j))
    logs_spec = pl.BlockSpec((1, 2), lambda j: (0, 0),
                             memory_space=pltpu.MemorySpace.SMEM)

    in_specs = [x_spec, w_spec]
    if do_sample or do_logs:
        in_specs.append(w_spec)
    if do_sample:
        in_specs.append(w_spec)
    in_specs.append(b_spec)
    if do_sample or do_logs:
        in_specs.append(b_spec)
    if do_sample:
        in_specs.append(b_spec)

    y_struct = jax.ShapeDtypeStruct((B, out_f), jnp.float32)
    if do_logs:
        out_shape = (y_struct, jax.ShapeDtypeStruct((1, 2), jnp.float32))
        out_specs = (y_spec, logs_spec)
        # logs output is a resident accumulator across the grid -> "arbitrary"
        dims = ("arbitrary",)
    else:
        out_shape = (y_struct,)
        out_specs = (y_spec,)
        # independent output tiles -> megacore-shardable on v7x
        dims = ("parallel",)

    kernel = _make_kernel(do_sample, do_logs, mxu_dtype)

    result = pl.pallas_call(
        kernel,
        out_shape=out_shape,
        grid_spec=pltpu.PrefetchScalarGridSpec(
            num_scalar_prefetch=0,
            grid=(n_tiles,),
            in_specs=in_specs,
            out_specs=out_specs,
        ),
        compiler_params=pltpu.CompilerParams(dimension_semantics=dims),
    )(*inputs)

    if do_logs:
        y, logs = result
        return y, logs[0, 0], logs[0, 1]
    (y,) = result
    return y, jnp.float32(0.0), jnp.float32(0.0)


def _reference(x, wmu, wrho, bmu, brho, weps, beps, *, sample, logs):
    """Pure-JAX reference of the exact PyTorch math."""
    sigma_w = jnp.log1p(jnp.exp(wrho))
    sigma_b = jnp.log1p(jnp.exp(brho))
    if sample:
        w = wmu + sigma_w * weps
        b = bmu + sigma_b * beps
    else:
        w, b = wmu, bmu
    y = x @ w.T + b
    if not logs:
        return y, jnp.float32(0.0), jnp.float32(0.0)

    def mix(v):
        p1 = jnp.exp(-0.5 * (v / SIGMA_1) ** 2) / (SIGMA_1 * SQRT_2PI)
        p2 = jnp.exp(-0.5 * (v / SIGMA_2) ** 2) / (SIGMA_2 * SQRT_2PI)
        return jnp.sum(jnp.log(PI_MIX * p1 + (1.0 - PI_MIX) * p2))

    def gauss(v, mu, s):
        return jnp.sum(-jnp.log(SQRT_2PI) - jnp.log(s)
                       - (v - mu) ** 2 / (2.0 * s ** 2))

    lp = mix(w) + mix(b)
    lvp = gauss(w, wmu, sigma_w) + gauss(b, bmu, sigma_b)
    return y, lp, lvp


if __name__ == "__main__":
    root = jax.random.PRNGKey(0)

    def make_params(key, in_f, out_f):
        k_wmu, k_wrho, k_bmu, k_brho = jax.random.split(key, 4)
        wmu = jax.random.uniform(k_wmu, (out_f, in_f), jnp.float32, -0.2, 0.2)
        wrho = jax.random.uniform(k_wrho, (out_f, in_f), jnp.float32, -5.0, -4.0)
        bmu = jax.random.uniform(k_bmu, (out_f,), jnp.float32, -0.2, 0.2)
        brho = jax.random.uniform(k_brho, (out_f,), jnp.float32, -5.0, -4.0)
        return wmu, wrho, bmu, brho

    def check(B, IN_F, OUT_F, *, sample, logs, block_n=None,
              mxu_dtype=jnp.float32, y_rtol=1e-5, y_atol=1e-5, seed=0):
        kk = jax.random.fold_in(root, seed)
        k_p, k_x, k_eps = jax.random.split(kk, 3)
        x = jax.random.normal(k_x, (B, IN_F), jnp.float32)
        wmu, wrho, bmu, brho = make_params(k_p, IN_F, OUT_F)

        y, lp, lvp = bayesian_linear(
            x, wmu, wrho, bmu, brho, key=k_eps,
            sample=sample, calculate_log_probs=logs,
            block_n=block_n, mxu_dtype=mxu_dtype)
        jax.block_until_ready((y, lp, lvp))

        if sample:
            kw, kb = jax.random.split(k_eps)
            w_eps = jax.random.normal(kw, (OUT_F, IN_F), jnp.float32)
            b_eps = jax.random.normal(kb, (OUT_F,), jnp.float32)
        else:
            w_eps = jnp.zeros((OUT_F, IN_F), jnp.float32)
            b_eps = jnp.zeros((OUT_F,), jnp.float32)
        y_r, lp_r, lvp_r = _reference(x, wmu, wrho, bmu, brho, w_eps, b_eps,
                                      sample=sample, logs=logs)

        np.testing.assert_allclose(np.asarray(y), np.asarray(y_r),
                                   rtol=y_rtol, atol=y_atol)
        if logs:
            np.testing.assert_allclose(float(lp), float(lp_r),
                                       rtol=2e-4, atol=1e-2)
            np.testing.assert_allclose(float(lvp), float(lvp_r),
                                       rtol=2e-4, atol=1e-2)
        else:
            assert float(lp) == 0.0 and float(lvp) == 0.0

    # 1) toy BayesianLinear(32, 16), training path (sample + log-probs), f32 MXU
    check(2, 32, 16, sample=True, logs=True, seed=1)

    # 2) larger layer: tiled out_features grid (2 tiles of 128) with SMEM
    #    log-prob accumulation across tiles, bf16 MXU operands (v6e/v7x path)
    check(8, 128, 256, sample=True, logs=True, block_n=128,
          mxu_dtype=jnp.bfloat16, y_rtol=5e-2, y_atol=5e-2, seed=2)

    # 3) eval + explicit log-probs: w = mu, no eps input DMA'd
    check(2, 32, 16, sample=False, logs=True, seed=3)

    # 4) pure inference: no eps, no rho, no log-prob work, "parallel" grid axis
    check(2, 32, 16, sample=False, logs=False, seed=4)

    print("KERNEL_OK")
</pallas_src>

<mosaic_0001>
module attributes {stable_mosaic.version = 11 : i64} {
  func.func @kernel(%arg0: i32, %arg1: memref<2x32xf32, #tpu.memory_space<vmem>>, %arg2: memref<32x16xf32, #tpu.memory_space<vmem>>, %arg3: memref<32x16xf32, #tpu.memory_space<vmem>>, %arg4: memref<32x16xf32, #tpu.memory_space<vmem>>, %arg5: memref<1x16xf32, #tpu.memory_space<vmem>>, %arg6: memref<1x16xf32, #tpu.memory_space<vmem>>, %arg7: memref<1x16xf32, #tpu.memory_space<vmem>>, %arg8: memref<2x16xf32, #tpu.memory_space<vmem>>, %arg9: memref<1x2xf32, #tpu.memory_space<smem>>) attributes {dimension_semantics = [#tpu.dimension_semantics<arbitrary>], iteration_bounds = array<i64: 1>, scalar_prefetch = 0 : i64, scratch_operands = 0 : i64, tpu.core_type = #tpu.core_type<tc>, window_params = [{pipeline_mode = #tpu.pipeline_mode<synchronous>, transform_indices = @transform_0, window_bounds = array<i64: 2, 32>}, {transform_indices = @transform_1, window_bounds = array<i64: 32, 16>}, {transform_indices = @transform_2, window_bounds = array<i64: 32, 16>}, {transform_indices = @transform_3, window_bounds = array<i64: 32, 16>}, {transform_indices = @transform_4, window_bounds = array<i64: 1, 16>}, {transform_indices = @transform_5, window_bounds = array<i64: 1, 16>}, {transform_indices = @transform_6, window_bounds = array<i64: 1, 16>}, {transform_indices = @transform_7, window_bounds = array<i64: 2, 16>}, {transform_indices = @transform_8, window_bounds = array<i64: 1, 2>}]} {
    %c0 = arith.constant 0 : index
    %c0_0 = arith.constant 0 : index
    %0 = vector.load %arg2[%c0, %c0_0] : memref<32x16xf32, #tpu.memory_space<vmem>>, vector<32x16xf32>
    %c0_1 = arith.constant 0 : index
    %c0_2 = arith.constant 0 : index
    %1 = vector.load %arg5[%c0_1, %c0_2] : memref<1x16xf32, #tpu.memory_space<vmem>>, vector<1x16xf32>
    %c0_3 = arith.constant 0 : index
    %c0_4 = arith.constant 0 : index
    %2 = vector.load %arg3[%c0_3, %c0_4] : memref<32x16xf32, #tpu.memory_space<vmem>>, vector<32x16xf32>
    %cst = arith.constant 0.000000e+00 : f32
    %3 = vector.broadcast %cst : f32 to vector<32x16xf32>
    %4 = arith.maximumf %2, %3 : vector<32x16xf32>
    %5 = math.absf %2 : vector<32x16xf32>
    %cst_5 = arith.constant 0.000000e+00 : f32
    %6 = vector.broadcast %cst_5 : f32 to vector<32x16xf32>
    %7 = arith.subf %6, %5 : vector<32x16xf32>
    %8 = math.exp %7 : vector<32x16xf32>
    %9 = math.log1p %8 : vector<32x16xf32>
    %10 = arith.addf %4, %9 : vector<32x16xf32>
    %c0_6 = arith.constant 0 : index
    %c0_7 = arith.constant 0 : index
    %11 = vector.load %arg6[%c0_6, %c0_7] : memref<1x16xf32, #tpu.memory_space<vmem>>, vector<1x16xf32>
    %cst_8 = arith.constant 0.000000e+00 : f32
    %12 = vector.broadcast %cst_8 : f32 to vector<1x16xf32>
    %13 = arith.maximumf %11, %12 : vector<1x16xf32>
    %14 = math.absf %11 : vector<1x16xf32>
    %cst_9 = arith.constant 0.000000e+00 : f32
    %15 = vector.broadcast %cst_9 : f32 to vector<1x16xf32>
    %16 = arith.subf %15, %14 : vector<1x16xf32>
    %17 = math.exp %16 : vector<1x16xf32>
    %18 = math.log1p %17 : vector<1x16xf32>
    %19 = arith.addf %13, %18 : vector<1x16xf32>
    %c0_10 = arith.constant 0 : index
    %c0_11 = arith.constant 0 : index
    %20 = vector.load %arg4[%c0_10, %c0_11] : memref<32x16xf32, #tpu.memory_space<vmem>>, vector<32x16xf32>
    %c0_12 = arith.constant 0 : index
    %c0_13 = arith.constant 0 : index
    %21 = vector.load %arg7[%c0_12, %c0_13] : memref<1x16xf32, #tpu.memory_space<vmem>>, vector<1x16xf32>
    %22 = arith.mulf %10, %20 : vector<32x16xf32>
    %23 = arith.addf %0, %22 : vector<32x16xf32>
    %24 = arith.mulf %19, %21 : vector<1x16xf32>
    %25 = arith.addf %1, %24 : vector<1x16xf32>
    %c0_14 = arith.constant 0 : index
    %c0_15 = arith.constant 0 : index
    %26 = vector.load %arg1[%c0_14, %c0_15] : memref<2x32xf32, #tpu.memory_space<vmem>>, vector<2x32xf32>
    %cst_16 = arith.constant dense<0.000000e+00> : vector<2x16xf32>
    %27 = tpu.matmul %26, %23, %cst_16 {dimension_numbers = #tpu.dot_dimension_numbers<[1], [0], [0], [1], [0, 0, 1, 1], [], []>} : vector<2x32xf32>, vector<32x16xf32>, vector<2x16xf32> -> vector<2x16xf32>
    %28 = vector.broadcast %25 : vector<1x16xf32> to vector<2x16xf32>
    %29 = arith.addf %27, %28 : vector<2x16xf32>
    %c0_17 = arith.constant 0 : index
    %c0_18 = arith.constant 0 : index
    %30 = vector.load %arg8[%c0_17, %c0_18] : memref<2x16xf32, #tpu.memory_space<vmem>>, vector<2x16xf32>
    tpu.vector_store %arg8[%c0_17, %c0_18], %29 {strides = array<i32>} : memref<2x16xf32, #tpu.memory_space<vmem>>, vector<2x16xf32>,
    %31 = arith.mulf %23, %23 : vector<32x16xf32>
    %cst_19 = arith.constant -5.000000e-01 : f32
    %32 = vector.broadcast %cst_19 : f32 to vector<32x16xf32>
    %33 = arith.mulf %32, %31 : vector<32x16xf32>
    %34 = math.exp %33 : vector<32x16xf32>
    %cst_20 = arith.constant 0.199471146 : f32
    %35 = vector.broadcast %cst_20 : f32 to vector<32x16xf32>
    %36 = arith.mulf %35, %34 : vector<32x16xf32>
    %cst_21 = arith.constant -81377.3984 : f32
    %37 = vector.broadcast %cst_21 : f32 to vector<32x16xf32>
    %38 = arith.mulf %37, %31 : vector<32x16xf32>
    %39 = math.exp %38 : vector<32x16xf32>
    %cst_22 = arith.constant 80.4724045 : f32
    %40 = vector.broadcast %cst_22 : f32 to vector<32x16xf32>
    %41 = arith.mulf %40, %39 : vector<32x16xf32>
    %42 = arith.addf %36, %41 : vector<32x16xf32>
    %43 = math.log %42 : vector<32x16xf32>
    %44 = vector.shape_cast %43 : vector<32x16xf32> to vector<1x32x16xf32>
    %cst_23 = arith.constant dense<0.000000e+00> : vector<1xf32>
    %45 = vector.multi_reduction <add>, %44, %cst_23 [1, 2] : vector<1x32x16xf32> to vector<1xf32>
    %46 = vector.shape_cast %45 : vector<1xf32> to vector<1x1x1xf32>
    %47 = vector.extract %46[0, 0, 0] : f32 from vector<1x1x1xf32>
    %48 = arith.mulf %25, %25 : vector<1x16xf32>
    %cst_24 = arith.constant -5.000000e-01 : f32
    %49 = vector.broadcast %cst_24 : f32 to vector<1x16xf32>
    %50 = arith.mulf %49, %48 : vector<1x16xf32>
    %51 = math.exp %50 : vector<1x16xf32>
    %cst_25 = arith.constant 0.199471146 : f32
    %52 = vector.broadcast %cst_25 : f32 to vector<1x16xf32>
    %53 = arith.mulf %52, %51 : vector<1x16xf32>
    %cst_26 = arith.constant -81377.3984 : f32
    %54 = vector.broadcast %cst_26 : f32 to vector<1x16xf32>
    %55 = arith.mulf %54, %48 : vector<1x16xf32>
    %56 = math.exp %55 : vector<1x16xf32>
    %cst_27 = arith.constant 80.4724045 : f32
    %57 = vector.broadcast %cst_27 : f32 to vector<1x16xf32>
    %58 = arith.mulf %57, %56 : vector<1x16xf32>
    %59 = arith.addf %53, %58 : vector<1x16xf32>
    %60 = math.log %59 : vector<1x16xf32>
    %61 = vector.shape_cast %60 : vector<1x16xf32> to vector<1x1x16xf32>
    %cst_28 = arith.constant dense<0.000000e+00> : vector<1xf32>
    %62 = vector.multi_reduction <add>, %61, %cst_28 [1, 2] : vector<1x1x16xf32> to vector<1xf32>
    %63 = vector.shape_cast %62 : vector<1xf32> to vector<1x1x1xf32>
    %64 = vector.extract %63[0, 0, 0] : f32 from vector<1x1x1xf32>
    %65 = arith.addf %47, %64 : f32
    %66 = math.log %10 : vector<32x16xf32>
    %67 = vector.shape_cast %66 : vector<32x16xf32> to vector<1x32x16xf32>
    %cst_29 = arith.constant dense<0.000000e+00> : vector<1xf32>
    %68 = vector.multi_reduction <add>, %67, %cst_29 [1, 2] : vector<1x32x16xf32> to vector<1xf32>
    %69 = vector.shape_cast %68 : vector<1xf32> to vector<1x1x1xf32>
    %70 = vector.extract %69[0, 0, 0] : f32 from vector<1x1x1xf32>
    %cst_30 = arith.constant -485.199554 : f32
    %71 = arith.subf %cst_30, %70 : f32
    %72 = math.log %19 : vector<1x16xf32>
    %73 = vector.shape_cast %72 : vector<1x16xf32> to vector<1x1x16xf32>
    %cst_31 = arith.constant dense<0.000000e+00> : vector<1xf32>
    %74 = vector.multi_reduction <add>, %73, %cst_31 [1, 2] : vector<1x1x16xf32> to vector<1xf32>
    %75 = vector.shape_cast %74 : vector<1xf32> to vector<1x1x1xf32>
    %76 = vector.extract %75[0, 0, 0] : f32 from vector<1x1x1xf32>
    %77 = arith.subf %71, %76 : f32
    %78 = arith.mulf %20, %20 : vector<32x16xf32>
    %79 = vector.shape_cast %78 : vector<32x16xf32> to vector<1x32x16xf32>
    %cst_32 = arith.constant dense<0.000000e+00> : vector<1xf32>
    %80 = vector.multi_reduction <add>, %79, %cst_32 [1, 2] : vector<1x32x16xf32> to vector<1xf32>
    %81 = vector.shape_cast %80 : vector<1xf32> to vector<1x1x1xf32>
    %82 = vector.extract %81[0, 0, 0] : f32 from vector<1x1x1xf32>
    %83 = arith.mulf %21, %21 : vector<1x16xf32>
    %84 = vector.shape_cast %83 : vector<1x16xf32> to vector<1x1x16xf32>
    %cst_33 = arith.constant dense<0.000000e+00> : vector<1xf32>
    %85 = vector.multi_reduction <add>, %84, %cst_33 [1, 2] : vector<1x1x16xf32> to vector<1xf32>
    %86 = vector.shape_cast %85 : vector<1xf32> to vector<1x1x1xf32>
    %87 = vector.extract %86[0, 0, 0] : f32 from vector<1x1x1xf32>
    %88 = arith.addf %82, %87 : f32
    %cst_34 = arith.constant 5.000000e-01 : f32
    %89 = arith.mulf %cst_34, %88 : f32
    %90 = arith.subf %77, %89 : f32
    %c0_i32 = arith.constant 0 : i32
    %91 = arith.cmpi eq, %arg0, %c0_i32 : i32
    %92 = arith.extui %91 : i1 to i32
    %c0_i32_35 = arith.constant 0 : i32
    %93 = arith.cmpi ne, %92, %c0_i32_35 : i32
    scf.if %93 {
      %cst_43 = arith.constant 0.000000e+00 : f32
      %c0_44 = arith.constant 0 : index
      %c0_45 = arith.constant 0 : index
      %100 = memref.load %arg9[%c0_44, %c0_45] : memref<1x2xf32, #tpu.memory_space<smem>>
      memref.store %cst_43, %arg9[%c0_44, %c0_45] : memref<1x2xf32, #tpu.memory_space<smem>>
      %cst_46 = arith.constant 0.000000e+00 : f32
      %c0_47 = arith.constant 0 : index
      %c1_48 = arith.constant 1 : index
      %101 = memref.load %arg9[%c0_47, %c1_48] : memref<1x2xf32, #tpu.memory_space<smem>>
      memref.store %cst_46, %arg9[%c0_47, %c1_48] : memref<1x2xf32, #tpu.memory_space<smem>>
    } else {
    }
    %c0_36 = arith.constant 0 : index
    %c0_37 = arith.constant 0 : index
    %94 = memref.load %arg9[%c0_36, %c0_37] : memref<1x2xf32, #tpu.memory_space<smem>>
    %95 = arith.addf %94, %65 : f32
    %c0_38 = arith.constant 0 : index
    %c0_39 = arith.constant 0 : index
    %96 = memref.load %arg9[%c0_38, %c0_39] : memref<1x2xf32, #tpu.memory_space<smem>>
    memref.store %95, %arg9[%c0_38, %c0_39] : memref<1x2xf32, #tpu.memory_space<smem>>
    %c0_40 = arith.constant 0 : index
    %c1 = arith.constant 1 : index
    %97 = memref.load %arg9[%c0_40, %c1] : memref<1x2xf32, #tpu.memory_space<smem>>
    %98 = arith.addf %97, %90 : f32
    %c0_41 = arith.constant 0 : index
    %c1_42 = arith.constant 1 : index
    %99 = memref.load %arg9[%c0_41, %c1_42] : memref<1x2xf32, #tpu.memory_space<smem>>
    memref.store %98, %arg9[%c0_41, %c1_42] : memref<1x2xf32, #tpu.memory_space<smem>>
    return
  }
  func.func @transform_0(%arg0: i32) -> (i32, i32) {
    %c0_i32 = arith.constant 0 : i32
    %c0_i32_0 = arith.constant 0 : i32
    %c0_i32_1 = arith.constant 0 : i32
    return %c0_i32, %c0_i32_0 : i32, i32
  }
  func.func @transform_1(%arg0: i32) -> (i32, i32) {
    %c0_i32 = arith.constant 0 : i32
    %c0_i32_0 = arith.constant 0 : i32
    return %c0_i32, %arg0 : i32, i32
  }
  func.func @transform_2(%arg0: i32) -> (i32, i32) {
    %c0_i32 = arith.constant 0 : i32
    %c0_i32_0 = arith.constant 0 : i32
    return %c0_i32, %arg0 : i32, i32
  }
  func.func @transform_3(%arg0: i32) -> (i32, i32) {
    %c0_i32 = arith.constant 0 : i32
    %c0_i32_0 = arith.constant 0 : i32
    return %c0_i32, %arg0 : i32, i32
  }
  func.func @transform_4(%arg0: i32) -> (i32, i32) {
    %c0_i32 = arith.constant 0 : i32
    %c0_i32_0 = arith.constant 0 : i32
    return %c0_i32, %arg0 : i32, i32
  }
  func.func @transform_5(%arg0: i32) -> (i32, i32) {
    %c0_i32 = arith.constant 0 : i32
    %c0_i32_0 = arith.constant 0 : i32
    return %c0_i32, %arg0 : i32, i32
  }
  func.func @transform_6(%arg0: i32) -> (i32, i32) {
    %c0_i32 = arith.constant 0 : i32
    %c0_i32_0 = arith.constant 0 : i32
    return %c0_i32, %arg0 : i32, i32
  }
  func.func @transform_7(%arg0: i32) -> (i32, i32) {
    %c0_i32 = arith.constant 0 : i32
    %c0_i32_0 = arith.constant 0 : i32
    return %c0_i32, %arg0 : i32, i32
  }
  func.func @transform_8(%arg0: i32) -> (i32, i32) {
    %c0_i32 = arith.constant 0 : i32
    %c0_i32_0 = arith.constant 0 : i32
    %c0_i32_1 = arith.constant 0 : i32
    return %c0_i32, %c0_i32_0 : i32, i32
  }
}

</mosaic_0001>

<llo_original>
// kernel: tpu_custom_call.1
$region0: #{tpu_custom_call.1}
  #allocation0 [shape = 'u32[]', space=smem, size = 0x4, offset = 0x4, fixed_abs, tag = 'smem constant byte address 0x4 - core index']
  #allocation1 [shape = 'u32[144,128]{1,0:T(1,128)}', space=vmem, size = 0x12000, scoped, tag = 'internal scratch']
  %s0 = inlined_call_operand.vmem [shape: f32[2,32], index: 0, kind: input, shape index: {}]
  %s1 = inlined_call_operand.vmem [shape: f32[32,16], index: 1, kind: input, shape index: {}]
  %s2 = inlined_call_operand.vmem [shape: f32[32,16], index: 2, kind: input, shape index: {}]
  %s3 = inlined_call_operand.vmem [shape: f32[32,16], index: 3, kind: input, shape index: {}]
  %s4 = inlined_call_operand.vmem [shape: f32[1,16], index: 4, kind: input, shape index: {}]
  %s5 = inlined_call_operand.vmem [shape: f32[1,16], index: 5, kind: input, shape index: {}]
  %s6 = inlined_call_operand.vmem [shape: f32[1,16], index: 6, kind: input, shape index: {}]
  %s7 = inlined_call_operand.hbm [shape: f32[2,16], index: 7, kind: output, shape index: {0}]
  %s8 = inlined_call_operand.hbm [shape: f32[1,2], index: 8, kind: output, shape index: {1}]
  %9 = xla_tuple %s7, %s8
  %s10 = sld [smem:[#allocation0]]
  $region50: #{tpu_custom_call.1} parent=0
    _
  %s12 = ssub.s32 1, %s10
  %s13 = scalar_select 0, %s12, %s10
  $region1: #{tpu_custom_call.1} parent=0
    #allocation2 [shape = 'u8[1024]{0}', space=vmem, size = 0x400, scoped, tag = 'output window, operand 0, single buffered']
    #allocation3 [shape = 's32[1]{0}', space=sflag, size = 0x4, scoped, tag = 'scoped memory for tpu_custom_call.1']
    #allocation4 [shape = 's32[1]{0}', space=sflag, size = 0x4, scoped, tag = 'scoped memory for tpu_custom_call.1']
    #allocation5 [shape = 'u8[512]{0}', space=smem, size = 0x200, scoped, tag = 'output window, operand 1, single buffered']
    %14 = vsyncpa [#allocation3], 0
    %15 = vsyncpa [#allocation4], 0
    // Predicated region
    $region2: #{tpu_custom_call.1} parent=1 // pred_check
      _
    $region3: #{tpu_custom_call.1} parent=1 // pred_check_branch
      %17 = sbr.rel (0) target = $region5
    $region4: #{tpu_custom_call.1} parent=1 // pred_region
      _
    $region5: #{tpu_custom_call.1} parent=1 // pred_fallthru
      _
    // Predicated region
    $region6: #{tpu_custom_call.1} parent=1 // pred_check
      _
    $region7: #{tpu_custom_call.1} parent=1 // pred_check_branch
      %19 = sbr.rel (0) target = $region9
    $region8: #{tpu_custom_call.1} parent=1 // pred_region
      _
    $region9: #{tpu_custom_call.1} parent=1 // pred_fallthru
      _
    // Predicated region
    $region10: #{tpu_custom_call.1} parent=1 // pred_check
      _
    $region11: #{tpu_custom_call.1} parent=1 // pred_check_branch
      %21 = sbr.rel (0) target = $region13
    $region12: #{tpu_custom_call.1} parent=1 // pred_region
      _
    $region13: #{tpu_custom_call.1} parent=1 // pred_fallthru
      _
    // Predicated region
    $region14: #{tpu_custom_call.1} parent=1 // pred_check
      _
    $region15: #{tpu_custom_call.1} parent=1 // pred_check_branch
      %23 = sbr.rel (0) target = $region17
    $region16: #{tpu_custom_call.1} parent=1 // pred_region
      _
    $region17: #{tpu_custom_call.1} parent=1 // pred_fallthru
      _
    // Predicated region
    $region18: #{tpu_custom_call.1} parent=1 // pred_check
      _
    $region19: #{tpu_custom_call.1} parent=1 // pred_check_branch
      %25 = sbr.rel (0) target = $region21
    $region20: #{tpu_custom_call.1} parent=1 // pred_region
      _
    $region21: #{tpu_custom_call.1} parent=1 // pred_fallthru
      _
    // Predicated region
    $region22: #{tpu_custom_call.1} parent=1 // pred_check
      _
    $region23: #{tpu_custom_call.1} parent=1 // pred_check_branch
      %27 = sbr.rel (0) target = $region25
    $region24: #{tpu_custom_call.1} parent=1 // pred_region
      _
    $region25: #{tpu_custom_call.1} parent=1 // pred_fallthru
      _
    // Predicated region
    $region26: #{tpu_custom_call.1} parent=1 // pred_check
      _
    $region27: #{tpu_custom_call.1} parent=1 // pred_check_branch
      %29 = sbr.rel (0) target = $region29
    $region28: #{tpu_custom_call.1} parent=1 // pred_region
      _
    $region29: #{tpu_custom_call.1} parent=1 // pred_fallthru
      _
    %v30 = vld [vmem:[%s1] sm:$0xff]
    %v31 = vld [vmem:[%s1 + $0x8] sm:$0xff]
    %v32 = vld [vmem:[%s1 + $0x10] sm:$0xff]
    %v33 = vld [vmem:[%s1 + $0x18] sm:$0xff]
    %v34 = vld [vmem:[%s4] sm:$0x1]
    %v35 = vld [vmem:[%s2] sm:$0xff]
    %v36 = vld [vmem:[%s2 + $0x8] sm:$0xff]
    %v37 = vld [vmem:[%s2 + $0x10] sm:$0xff]
    %v38 = vld [vmem:[%s2 + $0x18] sm:$0xff]
    %v39 = vmax.f32 %v35, 0.0
    %v40 = vmax.f32 %v36, 0.0
    %v41 = vmax.f32 %v37, 0.0
    %v42 = vmax.f32 %v38, 0.0
    %v43 = vand.u32 2147483647, %v35
    %v44 = vand.u32 2147483647, %v36
    %v45 = vand.u32 2147483647, %v37
    %v46 = vand.u32 2147483647, %v38
    %v47 = vsub.f32 0.0, %v43
    %v48 = vsub.f32 0.0, %v44
    %v49 = vsub.f32 0.0, %v45
    %v50 = vsub.f32 0.0, %v46
    %v51 = vmul.f32 %v47, 1.442695
    %v52 = vpow.pop %v51
    %v53 = vmul.f32 %v48, 1.442695
    %v54 = vpow.pop %v53
    %v55 = vmul.f32 %v49, 1.442695
    %v56 = vpow.pop %v55
    %v57 = vmul.f32 %v50, 1.442695
    %v58 = vpow.pop %v57
    %v59 = vadd.f32 %v52, 1.0
    %v60 = vlog2.pop %v59
    %v61 = vmul.f32 %v60, 0.6931472
    %v62 = vmul.f32 -0.5, %v52
    %v63 = vadd.f32 %v62, 1.0
    %v64 = vmul.f32 %v63, %v52
    %v65 = vand.u32 2147483647, %v52
    %vm66 = vcmp.lt.f32.partialorder %v65, 0.0004427343
    %v67 = vsel %vm66, %v64, %v61
    %v68 = vadd.f32 %v54, 1.0
    %v69 = vlog2.pop %v68
    %v70 = vmul.f32 %v69, 0.6931472
    %v71 = vmul.f32 -0.5, %v54
    %v72 = vadd.f32 %v71, 1.0
    %v73 = vmul.f32 %v72, %v54
    %v74 = vand.u32 2147483647, %v54
    %vm75 = vcmp.lt.f32.partialorder %v74, 0.0004427343
    %v76 = vsel %vm75, %v73, %v70
    %v77 = vadd.f32 %v56, 1.0
    %v78 = vlog2.pop %v77
    %v79 = vmul.f32 %v78, 0.6931472
    %v80 = vmul.f32 -0.5, %v56
    %v81 = vadd.f32 %v80, 1.0
    %v82 = vmul.f32 %v81, %v56
    %v83 = vand.u32 2147483647, %v56
    %vm84 = vcmp.lt.f32.partialorder %v83, 0.0004427343
    %v85 = vsel %vm84, %v82, %v79
    %v86 = vadd.f32 %v58, 1.0
    %v87 = vlog2.pop %v86
    %v88 = vmul.f32 %v87, 0.6931472
    %v89 = vmul.f32 -0.5, %v58
    %v90 = vadd.f32 %v89, 1.0
    %v91 = vmul.f32 %v90, %v58
    %v92 = vand.u32 2147483647, %v58
    %vm93 = vcmp.lt.f32.partialorder %v92, 0.0004427343
    %v94 = vsel %vm93, %v91, %v88
    %v95 = vadd.f32 %v39, %v67
    %v96 = vadd.f32 %v40, %v76
    %v97 = vadd.f32 %v41, %v85
    %v98 = vadd.f32 %v42, %v94
    %v99 = vld [vmem:[%s5] sm:$0x1]
    %v100 = vmax.f32 %v99, 0.0
    %v101 = vand.u32 2147483647, %v99
    %v102 = vsub.f32 0.0, %v101
    %v103 = vmul.f32 %v102, 1.442695
    %v104 = vpow.pop %v103
    %v105 = vadd.f32 %v104, 1.0
    %v106 = vlog2.pop %v105
    %v107 = vmul.f32 %v106, 0.6931472
    %v108 = vmul.f32 -0.5, %v104
    %v109 = vadd.f32 %v108, 1.0
    %v110 = vmul.f32 %v109, %v104
    %v111 = vand.u32 2147483647, %v104
    %vm112 = vcmp.lt.f32.partialorder %v111, 0.0004427343
    %v113 = vsel %vm112, %v110, %v107
    %v114 = vadd.f32 %v100, %v113
    %v115 = vld [vmem:[%s3] sm:$0xff]
    %v116 = vld [vmem:[%s3 + $0x8] sm:$0xff]
    %v117 = vld [vmem:[%s3 + $0x10] sm:$0xff]
    %v118 = vld [vmem:[%s3 + $0x18] sm:$0xff]
    %v119 = vld [vmem:[%s6] sm:$0x1]
    %v120 = vmul.f32 %v95, %v115
    %v121 = vmul.f32 %v96, %v116
    %v122 = vmul.f32 %v97, %v117
    %v123 = vmul.f32 %v98, %v118
    %v124 = vadd.f32 %v30, %v120
    %v125 = vadd.f32 %v31, %v121
    %v126 = vadd.f32 %v32, %v122
    %v127 = vadd.f32 %v33, %v123
    %v128 = vmul.f32 %v114, %v119
    %v129 = vadd.f32 %v34, %v128
    %v130 = vld [vmem:[%s0] sm:$0x3]
    %v132 = vlaneseq
    %v133 = vshrl.u32 %v132, 7
    %v134 = vsub.s32 0, %v133
    %v135 = vrot.slane %v129, %v134
    %vm137 = vcmask 261120
    %v139 = vsel %vm137, %v130, 0
    %141 = vmatprep.subr.mxu0 0.0
    %142 = vmatpush1.msra.mxu0 0.0
    %143 = vmatprep.subr.mxu0 0.0
    %144 = vmatpush1.msra.mxu0 0.0
    %145 = vmatprep.subr.mxu0 0.0
    %146 = vmatpush1.msra.mxu0 0.0
    %147 = vmatprep.subr.mxu0 0.0
    %148 = vmatpush1.msra.mxu0 0.0
    %149 = vmatprep.subr.mxu0 0.0
    %150 = vmatpush1.msra.mxu0 0.0
    %151 = vmatprep.subr.mxu0 0.0
    %152 = vmatpush1.msra.mxu0 0.0
    %153 = vmatprep.subr.mxu0 0.0
    %154 = vmatpush1.msra.mxu0 0.0
    %155 = vmatprep.subr.mxu0 0.0
    %156 = vmatpush1.msra.mxu0 0.0
    %157 = vmatprep.subr.mxu0 0.0
    %158 = vmatpush1.msra.mxu0 0.0
    %159 = vmatprep.subr.mxu0 0.0
    %160 = vmatpush1.msra.mxu0 0.0
    %161 = vmatprep.subr.mxu0 0.0
    %162 = vmatpush1.msra.mxu0 0.0
    %163 = vmatprep.subr.mxu0 0.0
    %164 = vmatpush1.msra.mxu0 0.0
    %165 = vmatprep.subr.mxu0 0.0
    %166 = vmatpush1.msra.mxu0 %v127
    %167 = vmatprep.subr.mxu0 0.0
    %168 = vmatpush1.msra.mxu0 %v126
    %169 = vmatprep.subr.mxu0 0.0
    %170 = vmatpush1.msra.mxu0 %v125
    %171 = vmatprep.subr.mxu0 0.0
    %172 = vmatpush1.msra.mxu0 %v124
    %173 = vmatprep.subr.mxu0 0.0
    %174 = vmatpush2.msra.mxu0 0.0
    %175 = vmatprep.subr.mxu0 0.0
    %176 = vmatpush2.msra.mxu0 0.0
    %177 = vmatprep.subr.mxu0 0.0
    %178 = vmatpush2.msra.mxu0 0.0
    %179 = vmatprep.subr.mxu0 0.0
    %180 = vmatpush2.msra.mxu0 0.0
    %181 = vmatprep.subr.mxu0 0.0
    %182 = vmatpush2.msra.mxu0 0.0
    %183 = vmatprep.subr.mxu0 0.0
    %184 = vmatpush2.msra.mxu0 0.0
    %185 = vmatprep.subr.mxu0 0.0
    %186 = vmatpush2.msra.mxu0 0.0
    %187 = vmatprep.subr.mxu0 0.0
    %188 = vmatpush2.msra.mxu0 0.0
    %189 = vmatprep.subr.mxu0 0.0
    %190 = vmatpush2.msra.mxu0 0.0
    %191 = vmatprep.subr.mxu0 0.0
    %192 = vmatpush2.msra.mxu0 0.0
    %193 = vmatprep.subr.mxu0 0.0
    %194 = vmatpush2.msra.mxu0 0.0
    %195 = vmatprep.subr.mxu0 0.0
    %196 = vmatpush2.msra.mxu0 0.0
    %197 = vmatprep.subr.mxu0 0.0
    %198 = vmatpush2.msra.mxu0 0.0
    %199 = vmatprep.subr.mxu0 0.0
    %200 = vmatpush2.msra.mxu0 0.0
    %201 = vmatprep.subr.mxu0 0.0
    %202 = vmatpush2.msra.mxu0 0.0
    %203 = vmatprep.subr.mxu0 0.0
    %204 = vmatpush2.msra.mxu0 0.0
    %205 = vmatprep.mubr.f32.mxu0 0.0
    %206 = vmatmul.mubr.f32.gmra.mxu0 %v139
    %v207 = vpop.f32.mrf.mxu0
    %v208 = vadd.f32 %v135, %v207
    %v209 = vpop.f32.mrf.mxu0
    %210 = vdwg.mxu0
    %vm211 = vcmask 123904
    %212 = vst.msk [vmem:[#allocation2] sm:$0x3] %vm211, %v208
    %v213 = vmul.f32 %v124, %v124
    %v214 = vmul.f32 %v125, %v125
    %v215 = vmul.f32 %v126, %v126
    %v216 = vmul.f32 %v127, %v127
    %v217 = vmul.f32 %v213, -0.5
    %v218 = vmul.f32 %v214, -0.5
    %v219 = vmul.f32 %v215, -0.5
    %v220 = vmul.f32 %v216, -0.5
    %v221 = vmul.f32 %v217, 1.442695
    %v222 = vpow.pop %v221
    %v223 = vmul.f32 %v218, 1.442695
    %v224 = vpow.pop %v223
    %v225 = vmul.f32 %v219, 1.442695
    %v226 = vpow.pop %v225
    %v227 = vmul.f32 %v220, 1.442695
    %v228 = vpow.pop %v227
    %v229 = vmul.f32 %v222, 0.19947115
    %v230 = vmul.f32 %v224, 0.19947115
    %v231 = vmul.f32 %v226, 0.19947115
    %v232 = vmul.f32 %v228, 0.19947115
    %v233 = vmul.f32 %v213, -81377.4
    %v234 = vmul.f32 %v214, -81377.4
    %v235 = vmul.f32 %v215, -81377.4
    %v236 = vmul.f32 %v216, -81377.4
    %v237 = vmul.f32 %v233, 1.442695
    %v238 = vpow.pop %v237
    %v239 = vmul.f32 %v234, 1.442695
    %v240 = vpow.pop %v239
    %v241 = vmul.f32 %v235, 1.442695
    %v242 = vpow.pop %v241
    %v243 = vmul.f32 %v236, 1.442695
    %v244 = vpow.pop %v243
    %v245 = vmul.f32 %v238, 80.472404
    %v246 = vmul.f32 %v240, 80.472404
    %v247 = vmul.f32 %v242, 80.472404
    %v248 = vmul.f32 %v244, 80.472404
    %v249 = vadd.f32 %v229, %v245
    %v250 = vadd.f32 %v230, %v246
    %v251 = vadd.f32 %v231, %v247
    %v252 = vadd.f32 %v232, %v248
    %v253 = vlog2.pop %v249
    %v254 = vmul.f32 %v253, 0.6931472
    %v255 = vlog2.pop %v250
    %v256 = vmul.f32 %v255, 0.6931472
    %v257 = vlog2.pop %v251
    %v258 = vmul.f32 %v257, 0.6931472
    %v259 = vlog2.pop %v252
    %v260 = vmul.f32 %v259, 0.6931472
    %vm261 = vcmask 130048
    %v262 = vsel %vm261, %v254, 0.0
    %v263 = vsel %vm261, %v256, 0.0
    %v264 = vadd.f32 %v262, %v263
    %v265 = vsel %vm261, %v258, 0.0
    %v266 = vadd.f32 %v264, %v265
    %v267 = vsel %vm261, %v260, 0.0
    %v268 = vadd.f32 %v266, %v267
    %269 = vadd.xlane.f32.xlu0 %v268
    %v270 = vpop.xlane.xlu0 %269
    %v271 = vrot.slane %v270, 4
    %v272 = vadd.f32 %v270, %v271
    %v273 = vrot.slane %v272, 2
    %v274 = vadd.f32 %v272, %v273
    %v275 = vrot.slane %v274, 1
    %v276 = vadd.f32 %v274, %v275
    %s277 = vtos %v276
    %v278 = vmul.f32 %v129, %v129
    %v279 = vmul.f32 %v278, -0.5
    %v280 = vmul.f32 %v279, 1.442695
    %v281 = vpow.pop %v280
    %v282 = vmul.f32 %v281, 0.19947115
    %v283 = vmul.f32 %v278, -81377.4
    %v284 = vmul.f32 %v283, 1.442695
    %v285 = vpow.pop %v284
    %v286 = vmul.f32 %v285, 80.472404
    %v287 = vadd.f32 %v282, %v286
    %v288 = vlog2.pop %v287
    %v289 = vmul.f32 %v288, 0.6931472
    %vm290 = vcmask 122880
    %v291 = vsel %vm290, %v289, 0.0
    %292 = vadd.xlane.f32.xlu0 %v291
    %v293 = vpop.xlane.xlu0 %292
    %v294 = vrot.slane %v293, 4
    %v295 = vadd.f32 %v293, %v294
    %v296 = vrot.slane %v295, 2
    %v297 = vadd.f32 %v295, %v296
    %v298 = vrot.slane %v297, 1
    %v299 = vadd.f32 %v297, %v298
    %s300 = vtos %v299
    %s301 = sadd.f32 %s277, %s300
    %v302 = vlog2.pop %v95
    %v303 = vmul.f32 %v302, 0.6931472
    %v304 = vlog2.pop %v96
    %v305 = vmul.f32 %v304, 0.6931472
    %v306 = vlog2.pop %v97
    %v307 = vmul.f32 %v306, 0.6931472
    %v308 = vlog2.pop %v98
    %v309 = vmul.f32 %v308, 0.6931472
    %v310 = vsel %vm261, %v303, 0.0
    %v311 = vsel %vm261, %v305, 0.0
    %v312 = vadd.f32 %v310, %v311
    %v313 = vsel %vm261, %v307, 0.0
    %v314 = vadd.f32 %v312, %v313
    %v315 = vsel %vm261, %v309, 0.0
    %v316 = vadd.f32 %v314, %v315
    %317 = vadd.xlane.f32.xlu0 %v316
    %v318 = vpop.xlane.xlu0 %317
    %v319 = vrot.slane %v318, 4
    %v320 = vadd.f32 %v318, %v319
    %v321 = vrot.slane %v320, 2
    %v322 = vadd.f32 %v320, %v321
    %v323 = vrot.slane %v322, 1
    %v324 = vadd.f32 %v322, %v323
    %s325 = vtos %v324
    %s326 = ssub.f32 -485.19955, %s325
    %v327 = vlog2.pop %v114
    %v328 = vmul.f32 %v327, 0.6931472
    %v329 = vsel %vm290, %v328, 0.0
    %330 = vadd.xlane.f32.xlu0 %v329
    %v331 = vpop.xlane.xlu0 %330
    %v332 = vrot.slane %v331, 4
    %v333 = vadd.f32 %v331, %v332
    %v334 = vrot.slane %v333, 2
    %v335 = vadd.f32 %v333, %v334
    %v336 = vrot.slane %v335, 1
    %v337 = vadd.f32 %v335, %v336
    %s338 = vtos %v337
    %s339 = ssub.f32 %s326, %s338
    %v340 = vmul.f32 %v115, %v115
    %v341 = vmul.f32 %v116, %v116
    %v342 = vmul.f32 %v117, %v117
    %v343 = vmul.f32 %v118, %v118
    %v344 = vsel %vm261, %v340, 0.0
    %v345 = vsel %vm261, %v341, 0.0
    %v346 = vadd.f32 %v344, %v345
    %v347 = vsel %vm261, %v342, 0.0
    %v348 = vadd.f32 %v346, %v347
    %v349 = vsel %vm261, %v343, 0.0
    %v350 = vadd.f32 %v348, %v349
    %351 = vadd.xlane.f32.xlu0 %v350
    %v352 = vpop.xlane.xlu0 %351
    %v353 = vrot.slane %v352, 4
    %v354 = vadd.f32 %v352, %v353
    %v355 = vrot.slane %v354, 2
    %v356 = vadd.f32 %v354, %v355
    %v357 = vrot.slane %v356, 1
    %v358 = vadd.f32 %v356, %v357
    %s359 = vtos %v358
    %v360 = vmul.f32 %v119, %v119
    %v361 = vsel %vm290, %v360, 0.0
    %362 = vadd.xlane.f32.xlu0 %v361
    %v363 = vpop.xlane.xlu0 %362
    %v364 = vrot.slane %v363, 4
    %v365 = vadd.f32 %v363, %v364
    %v366 = vrot.slane %v365, 2
    %v367 = vadd.f32 %v365, %v366
    %v368 = vrot.slane %v367, 1
    %v369 = vadd.f32 %v367, %v368
    %s370 = vtos %v369
    %s371 = sadd.f32 %s359, %s370
    %s372 = smul.f32 %s371, 0.5
    %s373 = ssub.f32 %s339, %s372
    %p374 = scmp.eq.s32.totalorder 0, 0
    // Predicated region
    $region30: #{tpu_custom_call.1} parent=1 // pred_check
      %p375 = pneg %p374
    $region31: #{tpu_custom_call.1} parent=1 // pred_check_branch
      %377 = sbr.rel (%p375) target = $region33
    $region32: #{tpu_custom_call.1} parent=1 // pred_region
      %s378 = scalar_lea.smem [#allocation5], 0
      %379 = sst [smem:[%s378]] 0.0
      %s380 = scalar_lea.smem [#allocation5], 1
      %381 = sst [smem:[%s380]] 0.0
    $region33: #{tpu_custom_call.1} parent=1 // pred_fallthru
      _
    %s382 = sld [smem:[#allocation5]]
    %s383 = sadd.f32 %s382, %s301
    %s384 = scalar_lea.smem [#allocation5], 0
    %385 = sst [smem:[%s384]] %s383
    %s386 = sld [smem:[#allocation5 + $0x1]]
    %s387 = sadd.f32 %s386, %s373
    %s388 = scalar_lea.smem [#allocation5], 1
    %389 = sst [smem:[%s388]] %s387
    // Predicated region
    $region34: #{tpu_custom_call.1} parent=1 // pred_check
      _
    $region35: #{tpu_custom_call.1} parent=1 // pred_check_branch
      %391 = sbr.rel (0) target = $region37
    $region36: #{tpu_custom_call.1} parent=1 // pred_region
      %s393 = ssub.s32 32, 32
      %394 = vsyncadd [#allocation3], %s393
      %s396 = sshll.u32 [#allocation2], 4
      %s397 = int_to_ptr.vmem [resolvable:$true] %s396
      %399 = dma.vmem_to_hbm [thread:$0]  %s397, 32, %s7, [#allocation3]
    $region37: #{tpu_custom_call.1} parent=1 // pred_fallthru
      _
    // Predicated region
    $region38: #{tpu_custom_call.1} parent=1 // pred_check
      _
    $region39: #{tpu_custom_call.1} parent=1 // pred_check_branch
      %401 = sbr.rel (0) target = $region41
    $region40: #{tpu_custom_call.1} parent=1 // pred_region
      %s403 = ssub.s32 16, 16
      %404 = vsyncadd [#allocation4], %s403
      %407 = dma.smem_to_hbm [#allocation5], 16, %s8, [#allocation4]
    $region41: #{tpu_custom_call.1} parent=1 // pred_fallthru
      _
    // Predicated region
    $region42: #{tpu_custom_call.1} parent=1 // pred_check
      _
    $region43: #{tpu_custom_call.1} parent=1 // pred_check_branch
      %409 = sbr.rel (0) target = $region45
    $region44: #{tpu_custom_call.1} parent=1 // pred_region
      %410 = dma.done [#allocation3], 32
    $region45: #{tpu_custom_call.1} parent=1 // pred_fallthru
      _
    // Predicated region
    $region46: #{tpu_custom_call.1} parent=1 // pred_check
      _
    $region47: #{tpu_custom_call.1} parent=1 // pred_check_branch
      %412 = sbr.rel (0) target = $region49
    $region48: #{tpu_custom_call.1} parent=1 // pred_region
      %413 = dma.done [#allocation4], 16
    $region49: #{tpu_custom_call.1} parent=1 // pred_fallthru
      _
    %414 = sfence
    %415 = vsyncpa [#allocation3], 1
    %416 = vsyncpa [#allocation4], 1

</llo_original>
